<compile_context>
chip_gen: v5e
topology: v5e:2x2
jax: 0.10.0
libtpu: 0.0.40
codegen_flags: <defaults>
</compile_context>

<pallas_src>
import functools

import jax
import jax.numpy as jnp
from jax.experimental import pallas as pl
from jax.experimental.pallas import tpu as pltpu


def focal_loss_kernel(x_ref, t_ref, o_ref, acc_ref, *, gamma, n_total, block_rows):
    # x_ref: (TN, C) logits tile, t_ref: (TN, 1) int32 targets tile,
    # o_ref: (1, 1, 1) f32 per-partition partial sum, acc_ref: (1, 1) f32 scratch.
    t_axis = pl.program_id(1)

    @pl.when(t_axis == 0)
    def _():
        acc_ref[...] = jnp.zeros_like(acc_ref)

    x = x_ref[...].astype(jnp.float32)                     # (TN, C)
    tgt = t_ref[...]                                       # (TN, 1) int32

    # Stable log-sum-exp over the class axis (the only (TN, C)-wide EUP pass).
    m = jnp.max(x, axis=-1, keepdims=True)                 # (TN, 1)
    sh = x - m
    lse = jnp.log(jnp.sum(jnp.exp(sh), axis=-1, keepdims=True))   # (TN, 1)

    # Gather the target-class logit with a one-hot select (no dynamic gather).
    class_ids = jax.lax.broadcasted_iota(jnp.int32, x.shape, 1)   # (TN, C)
    x_t = jnp.sum(jnp.where(class_ids == tgt, x, 0.0),
                  axis=-1, keepdims=True)                  # (TN, 1)

    # Focal term for the target class only (exactly what NLL picks out).
    logp_t = (x_t - m) - lse                               # (TN, 1)
    p_t = jnp.exp(logp_t)
    one_minus_p = jnp.maximum(1.0 - p_t, 0.0)
    if gamma == 2.0:
        mod = one_minus_p * one_minus_p                    # VPU square, no pow
    else:
        mod = one_minus_p ** gamma
    focal_t = mod * logp_t                                 # (TN, 1)

    # Mask rows beyond the true batch size (partial / duplicated tiles).
    tile_idx = pl.program_id(0) * pl.num_programs(1) + t_axis
    row_ids = (jax.lax.broadcasted_iota(jnp.int32, focal_t.shape, 0)
               + tile_idx * block_rows)
    contrib = jnp.where(row_ids < n_total, focal_t, 0.0)

    acc_ref[...] += jnp.sum(contrib, axis=(0, 1), keepdims=True)

    @pl.when(t_axis == pl.num_programs(1) - 1)
    def _():
        o_ref[...] = acc_ref[...].reshape(1, 1, 1)


def focal_loss(logits, target, gamma=2.0, block_rows=256, num_partitions=2):
    """logits: [N, C] float (any float dtype), target: [N] int. Scalar f32 loss."""
    n, c = logits.shape
    t2 = target.astype(jnp.int32).reshape(n, 1)

    # Rows per tile: multiple of 8 (sublane) unless one tile covers the batch.
    if n <= block_rows:
        tn = n
    else:
        tn = max(8, (block_rows // 8) * 8)

    tiles_total = pl.cdiv(n, tn)
    p = num_partitions if tiles_total >= num_partitions else 1
    t_per_p = pl.cdiv(tiles_total, p)

    def idx(pi, ti):
        # Clamp so overhanging / duplicated tiles re-read a valid tile; their
        # contribution is masked to zero inside the kernel by the row mask.
        return (jnp.minimum(pi * t_per_p + ti, tiles_total - 1), 0)

    kernel = functools.partial(
        focal_loss_kernel, gamma=gamma, n_total=n, block_rows=tn)

    partials = pl.pallas_call(
        kernel,
        out_shape=jax.ShapeDtypeStruct((p, 1, 1), jnp.float32),
        grid=(p, t_per_p),
        in_specs=[
            pl.BlockSpec((tn, c), idx),        # logits tile (native dtype DMA)
            pl.BlockSpec((tn, 1), idx),        # target tile
        ],
        out_specs=pl.BlockSpec((1, 1, 1), lambda pi, ti: (pi, 0, 0)),
        scratch_shapes=[pltpu.VMEM((1, 1), jnp.float32)],
        compiler_params=pltpu.CompilerParams(
            dimension_semantics=("parallel", "arbitrary"),
            vmem_limit_bytes=32 * 1024 * 1024,
        ),
    )(logits, t2)

    return -jnp.sum(partials) / jnp.float32(n)


def focal_loss_ref(logits, target, gamma=2.0):
    logp = jax.nn.log_softmax(logits.astype(jnp.float32), axis=-1)
    p = jnp.exp(logp)
    focal = ((1.0 - p) ** gamma) * logp
    picked = jnp.take_along_axis(
        focal, target[:, None].astype(jnp.int32), axis=-1)[:, 0]
    return -jnp.mean(picked)


if __name__ == "__main__":
    key = jax.random.PRNGKey(0)
    k1, k2, k3, k4 = jax.random.split(key, 4)

    # Small case (single tile, single partition).
    N1, C1 = 8, 32
    x1 = jax.random.normal(k1, (N1, C1), dtype=jnp.float32)
    y1 = jax.random.randint(k2, (N1,), 0, C1, dtype=jnp.int32)
    out1 = focal_loss(x1, y1, gamma=2.0)
    jax.block_until_ready(out1)
    ref1 = focal_loss_ref(x1, y1, gamma=2.0)
    assert jnp.allclose(out1, ref1, atol=1e-5, rtol=1e-5), (out1, ref1)

    # Larger case: exercises multi-tile grid, 2-partition split and row masking.
    N2, C2 = 1000, 32
    x2 = jax.random.normal(k3, (N2, C2), dtype=jnp.float32)
    y2 = jax.random.randint(k4, (N2,), 0, C2, dtype=jnp.int32)
    out2 = focal_loss(x2, y2, gamma=2.0, block_rows=256)
    jax.block_until_ready(out2)
    ref2 = focal_loss_ref(x2, y2, gamma=2.0)
    assert jnp.allclose(out2, ref2, atol=1e-5, rtol=1e-5), (out2, ref2)

    print("KERNEL_OK")
</pallas_src>

<mosaic_0001>
module attributes {stable_mosaic.version = 11 : i64} {
  func.func @focal_loss_kernel(%arg0: i32, %arg1: i32, %arg2: memref<8x32xf32, #tpu.memory_space<vmem>>, %arg3: memref<8x1xi32, #tpu.memory_space<vmem>>, %arg4: memref<1x1x1xf32, #tpu.memory_space<vmem>>, %arg5: memref<1x1xf32, #tpu.memory_space<vmem>>) attributes {dimension_semantics = [#tpu.dimension_semantics<parallel>, #tpu.dimension_semantics<arbitrary>], iteration_bounds = array<i64: 1, 1>, scalar_prefetch = 0 : i64, scratch_operands = 1 : i64, tpu.core_type = #tpu.core_type<tc>, window_params = [{transform_indices = @transform_0, window_bounds = array<i64: 8, 32>}, {transform_indices = @transform_1, window_bounds = array<i64: 8, 1>}, {transform_indices = @transform_2, window_bounds = array<i64: 1, 1, 1>}]} {
    %c0_i32 = arith.constant 0 : i32
    %0 = arith.cmpi eq, %arg1, %c0_i32 : i32
    %1 = arith.extui %0 : i1 to i32
    %c0_i32_0 = arith.constant 0 : i32
    %2 = arith.cmpi ne, %1, %c0_i32_0 : i32
    scf.if %2 {
      %cst_18 = arith.constant 0.000000e+00 : f32
      %50 = vector.broadcast %cst_18 : f32 to vector<1x1xf32>
      %c0_19 = arith.constant 0 : index
      %c0_20 = arith.constant 0 : index
      %51 = vector.load %arg5[%c0_19, %c0_20] : memref<1x1xf32, #tpu.memory_space<vmem>>, vector<1x1xf32>
      tpu.vector_store %arg5[%c0_19, %c0_20], %50 {strides = array<i32>} : memref<1x1xf32, #tpu.memory_space<vmem>>, vector<1x1xf32>,
    } else {
    }
    %c0 = arith.constant 0 : index
    %c0_1 = arith.constant 0 : index
    %3 = vector.load %arg2[%c0, %c0_1] : memref<8x32xf32, #tpu.memory_space<vmem>>, vector<8x32xf32>
    %c0_2 = arith.constant 0 : index
    %c0_3 = arith.constant 0 : index
    %4 = vector.load %arg3[%c0_2, %c0_3] : memref<8x1xi32, #tpu.memory_space<vmem>>, vector<8x1xi32>
    %cst = arith.constant dense<0xFF800000> : vector<8xf32>
    %5 = vector.multi_reduction <maximumf>, %3, %cst [1] : vector<8x32xf32> to vector<8xf32>
    %6 = vector.shape_cast %5 : vector<8xf32> to vector<8x1xf32>
    %7 = vector.broadcast %6 : vector<8x1xf32> to vector<8x32xf32>
    %8 = arith.subf %3, %7 : vector<8x32xf32>
    %9 = math.exp %8 : vector<8x32xf32>
    %cst_4 = arith.constant dense<0.000000e+00> : vector<8xf32>
    %10 = vector.multi_reduction <add>, %9, %cst_4 [1] : vector<8x32xf32> to vector<8xf32>
    %11 = vector.shape_cast %10 : vector<8xf32> to vector<8x1xf32>
    %12 = math.log %11 : vector<8x1xf32>
    %13 = tpu.iota {dimensions = array<i32: 1>} : vector<8x32xi32>
    %14 = vector.broadcast %4 : vector<8x1xi32> to vector<8x32xi32>
    %15 = arith.cmpi eq, %13, %14 : vector<8x32xi32>
    %cst_5 = arith.constant 0.000000e+00 : f32
    %16 = vector.broadcast %cst_5 : f32 to vector<8x32xf32>
    %17 = arith.select %15, %3, %16 : vector<8x32xi1>, vector<8x32xf32>
    %cst_6 = arith.constant dense<0.000000e+00> : vector<8xf32>
    %18 = vector.multi_reduction <add>, %17, %cst_6 [1] : vector<8x32xf32> to vector<8xf32>
    %19 = vector.shape_cast %18 : vector<8xf32> to vector<8x1xf32>
    %20 = arith.subf %19, %6 : vector<8x1xf32>
    %21 = arith.subf %20, %12 : vector<8x1xf32>
    %22 = math.exp %21 : vector<8x1xf32>
    %cst_7 = arith.constant 1.000000e+00 : f32
    %23 = vector.broadcast %cst_7 : f32 to vector<8x1xf32>
    %24 = arith.subf %23, %22 : vector<8x1xf32>
    %cst_8 = arith.constant 0.000000e+00 : f32
    %25 = vector.broadcast %cst_8 : f32 to vector<8x1xf32>
    %26 = arith.maximumf %24, %25 : vector<8x1xf32>
    %27 = arith.mulf %26, %26 : vector<8x1xf32>
    %28 = arith.mulf %27, %21 : vector<8x1xf32>
    %c1_i32 = arith.constant 1 : i32
    %29 = arith.muli %arg0, %c1_i32 : i32
    %30 = arith.addi %29, %arg1 : i32
    %31 = tpu.iota {dimensions = array<i32: 0>} : vector<8x1xi32>
    %c8_i32 = arith.constant 8 : i32
    %32 = arith.muli %30, %c8_i32 : i32
    %33 = vector.broadcast %32 : i32 to vector<8x1xi32>
    %34 = arith.addi %31, %33 : vector<8x1xi32>
    %c8_i32_9 = arith.constant 8 : i32
    %35 = vector.broadcast %c8_i32_9 : i32 to vector<8x1xi32>
    %36 = arith.cmpi slt, %34, %35 : vector<8x1xi32>
    %cst_10 = arith.constant 0.000000e+00 : f32
    %37 = vector.broadcast %cst_10 : f32 to vector<8x1xf32>
    %38 = arith.select %36, %28, %37 : vector<8x1xi1>, vector<8x1xf32>
    %c0_11 = arith.constant 0 : index
    %c0_12 = arith.constant 0 : index
    %39 = vector.load %arg5[%c0_11, %c0_12] : memref<1x1xf32, #tpu.memory_space<vmem>>, vector<1x1xf32>
    %40 = vector.shape_cast %38 : vector<8x1xf32> to vector<1x8x1xf32>
    %cst_13 = arith.constant dense<0.000000e+00> : vector<1xf32>
    %41 = vector.multi_reduction <add>, %40, %cst_13 [1, 2] : vector<1x8x1xf32> to vector<1xf32>
    %42 = vector.shape_cast %41 : vector<1xf32> to vector<1x1x1xf32>
    %43 = vector.extract %42[0, 0, 0] : f32 from vector<1x1x1xf32>
    %44 = vector.broadcast %43 : f32 to vector<1x1xf32>
    %45 = arith.addf %39, %44 : vector<1x1xf32>
    %c0_14 = arith.constant 0 : index
    %c0_15 = arith.constant 0 : index
    %46 = vector.load %arg5[%c0_14, %c0_15] : memref<1x1xf32, #tpu.memory_space<vmem>>, vector<1x1xf32>
    tpu.vector_store %arg5[%c0_14, %c0_15], %45 {strides = array<i32>} : memref<1x1xf32, #tpu.memory_space<vmem>>, vector<1x1xf32>,
    %c0_i32_16 = arith.constant 0 : i32
    %47 = arith.cmpi eq, %arg1, %c0_i32_16 : i32
    %48 = arith.extui %47 : i1 to i32
    %c0_i32_17 = arith.constant 0 : i32
    %49 = arith.cmpi ne, %48, %c0_i32_17 : i32
    scf.if %49 {
      %c0_18 = arith.constant 0 : index
      %c0_19 = arith.constant 0 : index
      %50 = vector.load %arg5[%c0_18, %c0_19] : memref<1x1xf32, #tpu.memory_space<vmem>>, vector<1x1xf32>
      %51 = vector.shape_cast %50 : vector<1x1xf32> to vector<1x1x1xf32>
      %c0_20 = arith.constant 0 : index
      %c0_21 = arith.constant 0 : index
      %c0_22 = arith.constant 0 : index
      %52 = vector.load %arg4[%c0_20, %c0_21, %c0_22] : memref<1x1x1xf32, #tpu.memory_space<vmem>>, vector<1x1x1xf32>
      tpu.vector_store %arg4[%c0_20, %c0_21, %c0_22], %51 {strides = array<i32>} : memref<1x1x1xf32, #tpu.memory_space<vmem>>, vector<1x1x1xf32>,
    } else {
    }
    return
  }
  func.func @transform_0(%arg0: i32, %arg1: i32) -> (i32, i32) {
    %c1_i32 = arith.constant 1 : i32
    %0 = arith.muli %arg0, %c1_i32 : i32
    %1 = arith.addi %0, %arg1 : i32
    %c0_i32 = arith.constant 0 : i32
    %2 = arith.minsi %1, %c0_i32 : i32
    %c0_i32_0 = arith.constant 0 : i32
    %c0_i32_1 = arith.constant 0 : i32
    return %2, %c0_i32_0 : i32, i32
  }
  func.func @transform_1(%arg0: i32, %arg1: i32) -> (i32, i32) {
    %c1_i32 = arith.constant 1 : i32
    %0 = arith.muli %arg0, %c1_i32 : i32
    %1 = arith.addi %0, %arg1 : i32
    %c0_i32 = arith.constant 0 : i32
    %2 = arith.minsi %1, %c0_i32 : i32
    %c0_i32_0 = arith.constant 0 : i32
    %c0_i32_1 = arith.constant 0 : i32
    return %2, %c0_i32_0 : i32, i32
  }
  func.func @transform_2(%arg0: i32, %arg1: i32) -> (i32, i32, i32) {
    %c0_i32 = arith.constant 0 : i32
    %c0_i32_0 = arith.constant 0 : i32
    %c0_i32_1 = arith.constant 0 : i32
    return %arg0, %c0_i32, %c0_i32_0 : i32, i32, i32
  }
}

</mosaic_0001>

<llo_original>
// kernel: tpu_custom_call.1
$region0: #{tpu_custom_call.1}
  #allocation0 [shape = 'u32[]', space=smem, size = 0x4, offset = 0x4, fixed_abs, tag = 'smem constant byte address 0x4 - core index']
  #allocation1 [shape = 'u32[72,128]{1,0:T(1,128)}', space=vmem, size = 0x9000, scoped, tag = 'internal scratch']
  #allocation2 [shape = 'f32[1,1]{1,0:T(1,128)}', space=vmem, size = 0x200, scoped, tag = 'scratch operand']
  %s0 = inlined_call_operand.vmem [shape: f32[8,32], index: 0, kind: input, shape index: {}]
  %s1 = inlined_call_operand.vmem [shape: s32[8,1], index: 1, kind: input, shape index: {}]
  %s2 = inlined_call_operand.hbm [shape: f32[1,1,1], index: 2, kind: output, shape index: {}]
  %s3 = sld [smem:[#allocation0]]
  $region26: #{tpu_custom_call.1} parent=0
    _
  %s5 = ssub.s32 1, %s3
  %s6 = scalar_select 0, %s5, %s3
  $region1: #{tpu_custom_call.1} parent=0
    #allocation3 [shape = 'u8[512]{0}', space=vmem, size = 0x400, scoped, tag = 'output window, operand 0, single buffered']
    #allocation4 [shape = 's32[1]{0}', space=sflag, size = 0x4, scoped, tag = 'scoped memory for tpu_custom_call.1']
    %7 = vsyncpa [#allocation4], 0
    // Predicated region
    $region2: #{tpu_custom_call.1} parent=1 // pred_check
      _
    $region3: #{tpu_custom_call.1} parent=1 // pred_check_branch
      %9 = sbr.rel (0) target = $region5
    $region4: #{tpu_custom_call.1} parent=1 // pred_region
      %s10 = sadd.s32 0, 0
      %p11 = scmp.lt.s32.totalorder %s10, 0
      %s12 = scalar_select %p11, %s10, 0
      %p13 = scmp.lt.s32.totalorder %s12, 0
      %s14 = scalar_select %p13, %s12, 0
      %s15 = smul.addr %s14, 8
      %s16 = scalar_lea.vmem %s0, %s15
      %s17 = sadd.s32 0, 0
      %p18 = scmp.lt.s32.totalorder %s17, 0
      %s19 = scalar_select %p18, %s17, 0
    $region5: #{tpu_custom_call.1} parent=1 // pred_fallthru
      _
    // Predicated region
    $region6: #{tpu_custom_call.1} parent=1 // pred_check
      _
    $region7: #{tpu_custom_call.1} parent=1 // pred_check_branch
      %21 = sbr.rel (0) target = $region9
    $region8: #{tpu_custom_call.1} parent=1 // pred_region
      %s22 = sadd.s32 0, 0
      %p23 = scmp.lt.s32.totalorder %s22, 0
      %s24 = scalar_select %p23, %s22, 0
      %p25 = scmp.lt.s32.totalorder %s24, 0
      %s26 = scalar_select %p25, %s24, 0
      %s27 = smul.addr %s26, 8
      %s28 = scalar_lea.vmem %s1, %s27
      %s29 = sadd.s32 0, 0
      %p30 = scmp.lt.s32.totalorder %s29, 0
      %s31 = scalar_select %p30, %s29, 0
    $region9: #{tpu_custom_call.1} parent=1 // pred_fallthru
      _
    %s32 = sadd.s32 0, 0
    %p33 = scmp.lt.s32.totalorder %s32, 0
    %s34 = scalar_select %p33, %s32, 0
    %p35 = scmp.lt.s32.totalorder %s34, 0
    %s36 = scalar_select %p35, %s34, 0
    %s37 = smul.addr %s36, 8
    %s38 = scalar_lea.vmem %s0, %s37
    %s39 = sadd.s32 0, 0
    %p40 = scmp.lt.s32.totalorder %s39, 0
    %s41 = scalar_select %p40, %s39, 0
    %p42 = scmp.lt.s32.totalorder %s41, 0
    %s43 = scalar_select %p42, %s41, 0
    %s44 = smul.addr %s43, 8
    %s45 = scalar_lea.vmem %s1, %s44
    %s46 = sadd.s32 0, 0
    %p47 = scmp.lt.s32.totalorder %s46, 0
    %s48 = scalar_select %p47, %s46, 0
    %p49 = scmp.lt.s32.totalorder %s48, 0
    %s50 = scalar_select %p49, %s48, 0
    %s51 = smul.addr %s50, 8
    %s52 = scalar_lea.vmem %s0, %s51
    %s53 = sadd.s32 0, 0
    %p54 = scmp.lt.s32.totalorder %s53, 0
    %s55 = scalar_select %p54, %s53, 0
    %s56 = sadd.s32 0, 0
    %p57 = scmp.lt.s32.totalorder %s56, 0
    %s58 = scalar_select %p57, %s56, 0
    %p59 = scmp.lt.s32.totalorder %s58, 0
    %s60 = scalar_select %p59, %s58, 0
    %s61 = smul.addr %s60, 8
    %s62 = scalar_lea.vmem %s1, %s61
    %s63 = sadd.s32 0, 0
    %p64 = scmp.lt.s32.totalorder %s63, 0
    %s65 = scalar_select %p64, %s63, 0
    %p66 = scmp.eq.s32.totalorder 0, 0
    // Predicated region
    $region10: #{tpu_custom_call.1} parent=1 // pred_check
      %p67 = pneg %p66
    $region11: #{tpu_custom_call.1} parent=1 // pred_check_branch
      %69 = sbr.rel (%p67) target = $region13
    $region12: #{tpu_custom_call.1} parent=1 // pred_region
      %vm70 = vcmask 0
      %71 = vst.msk [vmem:[#allocation2] sm:$0x1] %vm70, 0.0
    $region13: #{tpu_custom_call.1} parent=1 // pred_fallthru
      _
    %v72 = vld [vmem:[%s52] sm:$0xff]
    %v73 = vld [vmem:[%s62] sm:$0xff]
    %vm74 = vcmask 261120
    %v75 = vsel %vm74, %v72, -inf
    %76 = vmax.xlane.f32.xlu0 %v75
    %v77 = vpop.xlane.xlu0 %76
    %v78 = vsub.f32 %v72, %v77
    %v79 = vmul.f32 %v78, 1.442695
    %v80 = vpow.pop %v79
    %v81 = vsel %vm74, %v80, 0.0
    %82 = vadd.xlane.f32.xlu0 %v81
    %v83 = vpop.xlane.xlu0 %82
    %v84 = vlog2.pop %v83
    %v85 = vmul.f32 %v84, 0.6931472
    %v86 = vlaneseq
    %v87 = vand.u32 %v86, 127
    %88 = vset.pattern.permute.xlu0 0
    %89 = vperm.xlu0 %88, %v73
    %v90 = vpop.permute.xlu0 %89
    %vm91 = vcmp.eq.s32.totalorder %v87, %v90
    %v92 = vsel %vm91, %v72, 0.0
    %v93 = vsel %vm74, %v92, 0.0
    %94 = vadd.xlane.f32.xlu0 %v93
    %v95 = vpop.xlane.xlu0 %94
    %v96 = vsub.f32 %v95, %v77
    %v97 = vsub.f32 %v96, %v85
    %v98 = vmul.f32 %v97, 1.442695
    %v99 = vpow.pop %v98
    %v100 = vsub.f32 1.0, %v99
    %v101 = vmax.f32 %v100, 0.0
    %v102 = vmul.f32 %v101, %v101
    %v103 = vmul.f32 %v102, %v97
    %s104 = sadd.s32 0, 0
    %v105 = vlaneseq
    %v106 = vshrl.u32 %v105, 7
    %s107 = smul.u32 %s104, 8
    %v108 = vstv %s107
    %v109 = vadd.s32 %v106, %v108
    %vm110 = vcmp.lt.s32.totalorder %v109, 8
    %v111 = vsel %vm110, %v103, 0.0
    %v112 = vld [vmem:[#allocation2] sm:$0x1]
    %vm113 = vcmask 7168
    %v114 = vsel %vm113, %v111, 0.0
    %115 = vadd.xlane.f32.xlu0 %v114
    %v116 = vpop.xlane.xlu0 %115
    %v117 = vrot.slane %v116, 4
    %v118 = vadd.f32 %v116, %v117
    %v119 = vrot.slane %v118, 2
    %v120 = vadd.f32 %v118, %v119
    %v121 = vrot.slane %v120, 1
    %v122 = vadd.f32 %v120, %v121
    %s123 = vtos %v122
    %v124 = vstv %s123
    %v125 = vadd.f32 %v112, %v124
    %vm126 = vcmask 0
    %127 = vst.msk [vmem:[#allocation2] sm:$0x1] %vm126, %v125
    // Predicated region
    $region14: #{tpu_custom_call.1} parent=1 // pred_check
      %p128 = pneg %p66
    $region15: #{tpu_custom_call.1} parent=1 // pred_check_branch
      %130 = sbr.rel (%p128) target = $region17
    $region16: #{tpu_custom_call.1} parent=1 // pred_region
      %v131 = vld [vmem:[#allocation2] sm:$0x1]
      %132 = vst.msk [vmem:[#allocation3] sm:$0x1] %vm126, %v131
    $region17: #{tpu_custom_call.1} parent=1 // pred_fallthru
      _
    // Predicated region
    $region18: #{tpu_custom_call.1} parent=1 // pred_check
      _
    $region19: #{tpu_custom_call.1} parent=1 // pred_check_branch
      %134 = sbr.rel (0) target = $region21
    $region20: #{tpu_custom_call.1} parent=1 // pred_region
      %136 = vsyncadd [#allocation4], 0
      %s138 = sshll.u32 [#allocation3], 4
      %s139 = int_to_ptr.vmem [resolvable:$true] %s138
      %s140 = sshll.u32 %s2, 4
      %s141 = int_to_ptr.hbm [resolvable:$true] %s140
      %143 = dma.vmem_to_hbm [thread:$0]  %s139, 16, %s141, [#allocation4]
    $region21: #{tpu_custom_call.1} parent=1 // pred_fallthru
      _
    // Predicated region
    $region22: #{tpu_custom_call.1} parent=1 // pred_check
      _
    $region23: #{tpu_custom_call.1} parent=1 // pred_check_branch
      %145 = sbr.rel (0) target = $region25
    $region24: #{tpu_custom_call.1} parent=1 // pred_region
      %147 = dma.done [#allocation4], 16
    $region25: #{tpu_custom_call.1} parent=1 // pred_fallthru
      _
    %148 = vsyncpa [#allocation4], 1

</llo_original>
